<compile_context>
chip_gen: v6e
topology: v6e:2x2x1
jax: 0.10.0
libtpu: 0.0.40
codegen_flags: <defaults>
</compile_context>

<pallas_src>
import functools

import jax
import jax.numpy as jnp
from jax import lax
from jax.experimental import pallas as pl
from jax.experimental.pallas import tpu as pltpu


_LANE = 128          # lane width; also a multiple of every sublane packing (8/16/32)
_NEG_SLOPE = 0.01    # torch.nn.LeakyReLU default negative_slope


# --------------------------------------------------------------------------
# Kernel bodies
# --------------------------------------------------------------------------

def _leaky_relu(x):
    return jnp.maximum(x, _NEG_SLOPE * x)


def _mlp_tile(x, w1_ref, b1_ref, w2_ref, b2_ref, w3_ref, b3_ref):
    """Q-values for one batch tile.  Matmul operands use the weight dtype
    (f32 or bf16); accumulation / bias / activation are always f32."""
    wdt = w1_ref.dtype
    h1 = jnp.dot(x.astype(wdt), w1_ref[...],
                 preferred_element_type=jnp.float32) + b1_ref[...]
    h1 = _leaky_relu(h1)
    h2 = jnp.dot(h1.astype(wdt), w2_ref[...],
                 preferred_element_type=jnp.float32) + b2_ref[...]
    h2 = _leaky_relu(h2)
    q = jnp.dot(h2.astype(wdt), w3_ref[...],
                preferred_element_type=jnp.float32) + b3_ref[...]
    return q


def _q_kernel(x_ref, w1, b1, w2, b2, w3, b3, o_ref):
    """Full Q-table output: o (TB, A)."""
    q = _mlp_tile(x_ref[...], w1, b1, w2, b2, w3, b3)
    o_ref[...] = q.astype(o_ref.dtype)


def _gather_kernel(x_ref, w1, b1, w2, b2, w3, b3, act_ref, o_ref):
    """q_pred.gather(dim=1, index=hard_actions) fused in-kernel.

    Output block is lane-dense rank-1 (TB,)."""
    q = _mlp_tile(x_ref[...], w1, b1, w2, b2, w3, b3)
    lane = lax.broadcasted_iota(jnp.int32, q.shape, 1)          # (TB, A)
    picked = jnp.where(lane == act_ref[...], q, 0.0)            # one-hot select
    o_ref[...] = jnp.sum(picked, axis=1).astype(o_ref.dtype)    # (TB,)


def _expect_kernel(x_ref, w1, b1, w2, b2, w3, b3, p_ref, o_ref):
    """sum(action_probs * q_pred, axis=1) fused in-kernel: o (TB,)."""
    q = _mlp_tile(x_ref[...], w1, b1, w2, b2, w3, b3)
    p = p_ref[...].astype(jnp.float32)
    o_ref[...] = jnp.sum(p * q, axis=1).astype(o_ref.dtype)     # (TB,)


# --------------------------------------------------------------------------
# pallas_call wrapper
# --------------------------------------------------------------------------

def _round_up(x, m):
    return (x + m - 1) // m * m


def _choose_tile(n, tile_b):
    """128-aligned batch tile, clamped so n > 128 gives >= 2 grid steps
    (v7x has 2 TensorCores; a 1-step grid can't shard the parallel axis)."""
    tb = _round_up(min(max(tile_b, 1), max(n, 1)), _LANE)
    if n > _LANE:
        tb = min(tb, _round_up(pl.cdiv(n, 2), _LANE))
    return max(tb, _LANE)


@functools.partial(jax.jit, static_argnames=("mode", "tile_b"))
def _mlp_pallas(states, w1, b1, w2, b2, w3, b3, extra, *, mode, tile_b):
    n, f = states.shape
    h = w1.shape[1]
    a = w3.shape[1]

    tb = _choose_tile(n, tile_b)
    grid = (pl.cdiv(n, tb),)

    x_spec = pl.BlockSpec((tb, f), lambda i: (i, 0))
    w_specs = [
        pl.BlockSpec((f, h), lambda i: (0, 0)),   # W1 (VMEM-resident)
        pl.BlockSpec((1, h), lambda i: (0, 0)),   # b1
        pl.BlockSpec((h, h), lambda i: (0, 0)),   # W2
        pl.BlockSpec((1, h), lambda i: (0, 0)),   # b2
        pl.BlockSpec((h, a), lambda i: (0, 0)),   # W3
        pl.BlockSpec((1, a), lambda i: (0, 0)),   # b3
    ]
    in_specs = [x_spec] + w_specs
    args = [states, w1, b1, w2, b2, w3, b3]

    if mode == "q":
        kernel = _q_kernel
        out_shape = jax.ShapeDtypeStruct((n, a), jnp.float32)
        out_spec = pl.BlockSpec((tb, a), lambda i: (i, 0))
    elif mode == "gather":
        kernel = _gather_kernel
        in_specs.append(pl.BlockSpec((tb, 1), lambda i: (i, 0)))   # actions
        args.append(extra)
        out_shape = jax.ShapeDtypeStruct((n,), jnp.float32)        # lane-dense
        out_spec = pl.BlockSpec((tb,), lambda i: (i,))
    elif mode == "expect":
        kernel = _expect_kernel
        in_specs.append(pl.BlockSpec((tb, a), lambda i: (i, 0)))   # probs
        args.append(extra)
        out_shape = jax.ShapeDtypeStruct((n,), jnp.float32)        # lane-dense
        out_spec = pl.BlockSpec((tb,), lambda i: (i,))
    else:
        raise ValueError(f"unknown mode {mode!r}")

    return pl.pallas_call(
        kernel,
        out_shape=out_shape,
        grid_spec=pltpu.PrefetchScalarGridSpec(
            num_scalar_prefetch=0,
            grid=grid,
            in_specs=in_specs,
            out_specs=out_spec,
        ),
        compiler_params=pltpu.CompilerParams(
            dimension_semantics=("parallel",),
            # Narrow (F=16 / A=8 / 1-wide) blocks pad to 128 lanes in VMEM;
            # 48 MiB covers tb=8192 with margin and stays well under v7x's
            # 64 MiB physical VMEM.
            vmem_limit_bytes=48 * 1024 * 1024,
        ),
    )(*args)


def mlp_forward(states, params, hard_actions=None, action_probs=None,
                tile_b=8192, compute_dtype=jnp.float32):
    """Mirrors MLP.forward semantics.

    compute_dtype: dtype used for the matmul *operands* (states and weight
    matrices).  Use jnp.bfloat16 to halve the streamed HBM traffic; biases,
    accumulation and elementwise math always stay f32.
    """
    w1, b1, w2, b2, w3, b3 = params
    x = states.astype(compute_dtype)
    w1c, w2c, w3c = (w.astype(compute_dtype) for w in (w1, w2, w3))
    b1c, b2c, b3c = (b.astype(jnp.float32) for b in (b1, b2, b3))

    if hard_actions is not None:
        extra = hard_actions.astype(jnp.int32)[:, None]          # (N, 1)
        return _mlp_pallas(x, w1c, b1c, w2c, b2c, w3c, b3c, extra,
                           mode="gather", tile_b=tile_b)          # (N,)
    if action_probs is not None:
        extra = action_probs.astype(jnp.float32)                 # (N, A)
        return _mlp_pallas(x, w1c, b1c, w2c, b2c, w3c, b3c, extra,
                           mode="expect", tile_b=tile_b)          # (N,)
    return _mlp_pallas(x, w1c, b1c, w2c, b2c, w3c, b3c, None,
                       mode="q", tile_b=tile_b)                   # (N, A)


# --------------------------------------------------------------------------
# Params + pure-JAX reference
# --------------------------------------------------------------------------

def init_params(key, state_dims, num_actions, hidden_dims=64, dtype=jnp.float32):
    """PyTorch-Linear-style init; weights stored pre-transposed as (in, out)."""
    ks = jax.random.split(key, 6)

    def linear(kw, kb, fan_in, fan_out):
        bound = 1.0 / jnp.sqrt(fan_in)
        w = jax.random.uniform(kw, (fan_in, fan_out), dtype, -bound, bound)
        b = jax.random.uniform(kb, (1, fan_out), dtype, -bound, bound)
        return w, b

    w1, b1 = linear(ks[0], ks[1], state_dims, hidden_dims)
    w2, b2 = linear(ks[2], ks[3], hidden_dims, hidden_dims)
    w3, b3 = linear(ks[4], ks[5], hidden_dims, num_actions)
    return (w1, b1, w2, b2, w3, b3)


def _reference_forward(states, params, hard_actions=None, action_probs=None):
    w1, b1, w2, b2, w3, b3 = params
    lrelu = lambda v: jnp.where(v >= 0, v, _NEG_SLOPE * v)
    h1 = lrelu(states @ w1 + b1)
    h2 = lrelu(h1 @ w2 + b2)
    q = h2 @ w3 + b3
    if hard_actions is not None:
        return jnp.take_along_axis(q, hard_actions[:, None], axis=1)[:, 0]
    if action_probs is not None:
        return jnp.sum(action_probs * q, axis=1)
    return q


# --------------------------------------------------------------------------
# Self-test
# --------------------------------------------------------------------------

if __name__ == "__main__":
    key = jax.random.PRNGKey(0)
    k_param, k_state, k_act, k_prob = jax.random.split(key, 4)

    state_dims, num_actions, hidden_dims = 16, 8, 64
    params = init_params(k_param, state_dims, num_actions, hidden_dims)

    # NOTE on tolerances: TPU f32 matmuls run as bf16 passes at DEFAULT
    # precision both inside the kernel and in the XLA reference, so exact
    # 1e-5 agreement is not guaranteed; 2e-2 still catches any functional bug.
    TOL_F32 = dict(atol=2e-2, rtol=2e-2)
    TOL_BF16 = dict(atol=6e-2, rtol=6e-2)

    def check(n, ks, kp, ka):
        states = jax.random.normal(ks, (n, state_dims), jnp.float32)
        hard_actions = jax.random.randint(ka, (n,), 0, num_actions)
        action_probs = jax.nn.softmax(
            jax.random.normal(kp, (n, num_actions), jnp.float32), axis=1)

        ref_q = _reference_forward(states, params)
        ref_b = _reference_forward(states, params, hard_actions=hard_actions)
        ref_e = _reference_forward(states, params, action_probs=action_probs)

        # f32 path
        q_pred = mlp_forward(states, params)
        q_beh = mlp_forward(states, params, hard_actions=hard_actions)
        q_exp = mlp_forward(states, params, action_probs=action_probs)
        jax.block_until_ready((q_pred, q_beh, q_exp))
        assert q_pred.shape == (n, num_actions)
        assert q_beh.shape == (n,)
        assert q_exp.shape == (n,)
        assert jnp.allclose(q_pred, ref_q, **TOL_F32)
        assert jnp.allclose(q_beh, ref_b, **TOL_F32)
        assert jnp.allclose(q_exp, ref_e, **TOL_F32)

        # bf16-streamed operands (matmul inputs only), relaxed tolerance
        q_pred_bf = mlp_forward(states, params, compute_dtype=jnp.bfloat16)
        q_beh_bf = mlp_forward(states, params, hard_actions=hard_actions,
                               compute_dtype=jnp.bfloat16)
        q_exp_bf = mlp_forward(states, params, action_probs=action_probs,
                               compute_dtype=jnp.bfloat16)
        jax.block_until_ready((q_pred_bf, q_beh_bf, q_exp_bf))
        assert jnp.allclose(q_pred_bf, ref_q, **TOL_BF16)
        assert jnp.allclose(q_beh_bf, ref_b, **TOL_BF16)
        assert jnp.allclose(q_exp_bf, ref_e, **TOL_BF16)

    # Small batch: single (ragged) grid step, block larger than the array.
    check(10, k_state, k_prob, k_act)

    # Slightly larger batch: exercises the v7x >=2-step clamp (tb=256,
    # grid=2) and the ragged last block with masked rank-1 output writes.
    k_state2, k_prob2, k_act2 = jax.random.split(jax.random.PRNGKey(1), 3)
    check(300, k_state2, k_prob2, k_act2)

    print("KERNEL_OK")
</pallas_src>

<mosaic_0001>
module attributes {stable_mosaic.version = 11 : i64} {
  func.func @_q_kernel(%arg0: i32, %arg1: memref<128x16xf32, #tpu.memory_space<vmem>>, %arg2: memref<16x64xf32, #tpu.memory_space<vmem>>, %arg3: memref<1x64xf32, #tpu.memory_space<vmem>>, %arg4: memref<64x64xf32, #tpu.memory_space<vmem>>, %arg5: memref<1x64xf32, #tpu.memory_space<vmem>>, %arg6: memref<64x8xf32, #tpu.memory_space<vmem>>, %arg7: memref<1x8xf32, #tpu.memory_space<vmem>>, %arg8: memref<128x8xf32, #tpu.memory_space<vmem>>) attributes {dimension_semantics = [#tpu.dimension_semantics<parallel>], iteration_bounds = array<i64: 1>, scalar_prefetch = 0 : i64, scratch_operands = 0 : i64, tpu.core_type = #tpu.core_type<tc>, window_params = [{transform_indices = @transform_0, window_bounds = array<i64: 128, 16>}, {pipeline_mode = #tpu.pipeline_mode<synchronous>, transform_indices = @transform_1, window_bounds = array<i64: 16, 64>}, {pipeline_mode = #tpu.pipeline_mode<synchronous>, transform_indices = @transform_2, window_bounds = array<i64: 1, 64>}, {pipeline_mode = #tpu.pipeline_mode<synchronous>, transform_indices = @transform_3, window_bounds = array<i64: 64, 64>}, {pipeline_mode = #tpu.pipeline_mode<synchronous>, transform_indices = @transform_4, window_bounds = array<i64: 1, 64>}, {pipeline_mode = #tpu.pipeline_mode<synchronous>, transform_indices = @transform_5, window_bounds = array<i64: 64, 8>}, {pipeline_mode = #tpu.pipeline_mode<synchronous>, transform_indices = @transform_6, window_bounds = array<i64: 1, 8>}, {transform_indices = @transform_7, window_bounds = array<i64: 128, 8>}]} {
    %c0 = arith.constant 0 : index
    %c0_0 = arith.constant 0 : index
    %0 = vector.load %arg1[%c0, %c0_0] : memref<128x16xf32, #tpu.memory_space<vmem>>, vector<128x16xf32>
    %c0_1 = arith.constant 0 : index
    %c0_2 = arith.constant 0 : index
    %1 = vector.load %arg2[%c0_1, %c0_2] : memref<16x64xf32, #tpu.memory_space<vmem>>, vector<16x64xf32>
    %cst = arith.constant dense<0.000000e+00> : vector<128x64xf32>
    %2 = tpu.matmul %0, %1, %cst {dimension_numbers = #tpu.dot_dimension_numbers<[1], [0], [0], [1], [0, 0, 1, 1], [], []>} : vector<128x16xf32>, vector<16x64xf32>, vector<128x64xf32> -> vector<128x64xf32>
    %c0_3 = arith.constant 0 : index
    %c0_4 = arith.constant 0 : index
    %3 = vector.load %arg3[%c0_3, %c0_4] : memref<1x64xf32, #tpu.memory_space<vmem>>, vector<1x64xf32>
    %4 = vector.broadcast %3 : vector<1x64xf32> to vector<128x64xf32>
    %5 = arith.addf %2, %4 : vector<128x64xf32>
    %cst_5 = arith.constant 0.00999999977 : f32
    %6 = vector.broadcast %cst_5 : f32 to vector<128x64xf32>
    %7 = arith.mulf %6, %5 : vector<128x64xf32>
    %8 = arith.maximumf %5, %7 : vector<128x64xf32>
    %c0_6 = arith.constant 0 : index
    %c0_7 = arith.constant 0 : index
    %9 = vector.load %arg4[%c0_6, %c0_7] : memref<64x64xf32, #tpu.memory_space<vmem>>, vector<64x64xf32>
    %cst_8 = arith.constant dense<0.000000e+00> : vector<128x64xf32>
    %10 = tpu.matmul %8, %9, %cst_8 {dimension_numbers = #tpu.dot_dimension_numbers<[1], [0], [0], [1], [0, 0, 1, 1], [], []>} : vector<128x64xf32>, vector<64x64xf32>, vector<128x64xf32> -> vector<128x64xf32>
    %c0_9 = arith.constant 0 : index
    %c0_10 = arith.constant 0 : index
    %11 = vector.load %arg5[%c0_9, %c0_10] : memref<1x64xf32, #tpu.memory_space<vmem>>, vector<1x64xf32>
    %12 = vector.broadcast %11 : vector<1x64xf32> to vector<128x64xf32>
    %13 = arith.addf %10, %12 : vector<128x64xf32>
    %cst_11 = arith.constant 0.00999999977 : f32
    %14 = vector.broadcast %cst_11 : f32 to vector<128x64xf32>
    %15 = arith.mulf %14, %13 : vector<128x64xf32>
    %16 = arith.maximumf %13, %15 : vector<128x64xf32>
    %c0_12 = arith.constant 0 : index
    %c0_13 = arith.constant 0 : index
    %17 = vector.load %arg6[%c0_12, %c0_13] : memref<64x8xf32, #tpu.memory_space<vmem>>, vector<64x8xf32>
    %cst_14 = arith.constant dense<0.000000e+00> : vector<128x8xf32>
    %18 = tpu.matmul %16, %17, %cst_14 {dimension_numbers = #tpu.dot_dimension_numbers<[1], [0], [0], [1], [0, 0, 1, 1], [], []>} : vector<128x64xf32>, vector<64x8xf32>, vector<128x8xf32> -> vector<128x8xf32>
    %c0_15 = arith.constant 0 : index
    %c0_16 = arith.constant 0 : index
    %19 = vector.load %arg7[%c0_15, %c0_16] : memref<1x8xf32, #tpu.memory_space<vmem>>, vector<1x8xf32>
    %20 = vector.broadcast %19 : vector<1x8xf32> to vector<128x8xf32>
    %21 = arith.addf %18, %20 : vector<128x8xf32>
    %c0_17 = arith.constant 0 : index
    %c0_18 = arith.constant 0 : index
    %22 = vector.load %arg8[%c0_17, %c0_18] : memref<128x8xf32, #tpu.memory_space<vmem>>, vector<128x8xf32>
    tpu.vector_store %arg8[%c0_17, %c0_18], %21 {strides = array<i32>} : memref<128x8xf32, #tpu.memory_space<vmem>>, vector<128x8xf32>,
    return
  }
  func.func @transform_0(%arg0: i32) -> (i32, i32) {
    %c0_i32 = arith.constant 0 : i32
    %c0_i32_0 = arith.constant 0 : i32
    return %arg0, %c0_i32 : i32, i32
  }
  func.func @transform_1(%arg0: i32) -> (i32, i32) {
    %c0_i32 = arith.constant 0 : i32
    %c0_i32_0 = arith.constant 0 : i32
    %c0_i32_1 = arith.constant 0 : i32
    return %c0_i32, %c0_i32_0 : i32, i32
  }
  func.func @transform_2(%arg0: i32) -> (i32, i32) {
    %c0_i32 = arith.constant 0 : i32
    %c0_i32_0 = arith.constant 0 : i32
    %c0_i32_1 = arith.constant 0 : i32
    return %c0_i32, %c0_i32_0 : i32, i32
  }
  func.func @transform_3(%arg0: i32) -> (i32, i32) {
    %c0_i32 = arith.constant 0 : i32
    %c0_i32_0 = arith.constant 0 : i32
    %c0_i32_1 = arith.constant 0 : i32
    return %c0_i32, %c0_i32_0 : i32, i32
  }
  func.func @transform_4(%arg0: i32) -> (i32, i32) {
    %c0_i32 = arith.constant 0 : i32
    %c0_i32_0 = arith.constant 0 : i32
    %c0_i32_1 = arith.constant 0 : i32
    return %c0_i32, %c0_i32_0 : i32, i32
  }
  func.func @transform_5(%arg0: i32) -> (i32, i32) {
    %c0_i32 = arith.constant 0 : i32
    %c0_i32_0 = arith.constant 0 : i32
    %c0_i32_1 = arith.constant 0 : i32
    return %c0_i32, %c0_i32_0 : i32, i32
  }
  func.func @transform_6(%arg0: i32) -> (i32, i32) {
    %c0_i32 = arith.constant 0 : i32
    %c0_i32_0 = arith.constant 0 : i32
    %c0_i32_1 = arith.constant 0 : i32
    return %c0_i32, %c0_i32_0 : i32, i32
  }
  func.func @transform_7(%arg0: i32) -> (i32, i32) {
    %c0_i32 = arith.constant 0 : i32
    %c0_i32_0 = arith.constant 0 : i32
    return %arg0, %c0_i32 : i32, i32
  }
}

</mosaic_0001>

<llo_original>
// kernel: _mlp_pallas.1
$region0: #{_mlp_pallas.1}
  #allocation0 [shape = 'u32[]', space=smem, size = 0x4, offset = 0x4, fixed_abs, tag = 'smem constant byte address 0x4 - core index']
  #allocation1 [shape = 'u32[144,128]{1,0:T(1,128)}', space=vmem, size = 0x12000, scoped, tag = 'internal scratch']
  %s0 = inlined_call_operand.hbm [shape: f32[10,16], index: 0, kind: input, shape index: {}]
  %s1 = inlined_call_operand.hbm [shape: f32[16,64], index: 1, kind: input, shape index: {}]
  %s2 = inlined_call_operand.vmem [shape: f32[1,64], index: 2, kind: input, shape index: {}]
  %s3 = inlined_call_operand.vmem [shape: f32[64,64], index: 3, kind: input, shape index: {}]
  %s4 = inlined_call_operand.vmem [shape: f32[1,64], index: 4, kind: input, shape index: {}]
  %s5 = inlined_call_operand.vmem [shape: f32[64,8], index: 5, kind: input, shape index: {}]
  %s6 = inlined_call_operand.vmem [shape: f32[1,8], index: 6, kind: input, shape index: {}]
  %s7 = inlined_call_operand.vmem [shape: f32[10,8], index: 7, kind: output, shape index: {}]
  %s8 = sld [smem:[#allocation0]]
  $region80: #{_mlp_pallas.1} parent=0
    _
  %s10 = ssub.s32 1, %s8
  %s11 = scalar_select 0, %s10, %s8
  $region1: #{_mlp_pallas.1} parent=0
    #allocation2 [shape = 'u8[65536]{0}', space=vmem, size = 0x10000, scoped, tag = 'input window, operand 0, single buffered']
    #allocation3 [shape = 's32[1]{0}', space=sflag, size = 0x4, scoped, tag = 'scoped memory for _mlp_pallas.1']
    #allocation4 [shape = 'u8[8192]{0}', space=vmem, size = 0x2000, scoped, tag = 'input window, operand 1, single buffered']
    #allocation5 [shape = 's32[1]{0}', space=sflag, size = 0x4, scoped, tag = 'scoped memory for _mlp_pallas.1']
    #allocation6 [shape = 'u8[65536]{0}', space=vmem, size = 0x10000, scoped, tag = 'output window, operand 0, single buffered']
    %12 = vsyncpa [#allocation3], 0
    %13 = vsyncpa [#allocation5], 0
    // Predicated region
    $region2: #{_mlp_pallas.1} parent=1 // pred_check
      _
    $region3: #{_mlp_pallas.1} parent=1 // pred_check_branch
      %15 = sbr.rel (0) target = $region5
    $region4: #{_mlp_pallas.1} parent=1 // pred_region
      %s17 = ssub.s32 2048, 256
      %18 = vsyncadd [#allocation3], %s17
      %s19 = sshll.u32 [#allocation2], 4
      %s20 = int_to_ptr.vmem [resolvable:$true] %s19
      %25 = dma.hbm_to_vmem [thread:$0]  %s0, 256, %s20, [#allocation3], 128, 128, 8
    $region5: #{_mlp_pallas.1} parent=1 // pred_fallthru
      _
    // Predicated region
    $region6: #{_mlp_pallas.1} parent=1 // pred_check
      _
    $region7: #{_mlp_pallas.1} parent=1 // pred_check_branch
      %27 = sbr.rel (0) target = $region9
    $region8: #{_mlp_pallas.1} parent=1 // pred_region
      %s29 = ssub.s32 256, 256
      %30 = vsyncadd [#allocation5], %s29
      %s31 = sshll.u32 [#allocation4], 4
      %s32 = int_to_ptr.vmem [resolvable:$true] %s31
      %37 = dma.hbm_to_vmem [thread:$0]  %s1, 256, %s32, [#allocation5], 128, 128, 8
    $region9: #{_mlp_pallas.1} parent=1 // pred_fallthru
      _
    // Predicated region
    $region10: #{_mlp_pallas.1} parent=1 // pred_check
      _
    $region11: #{_mlp_pallas.1} parent=1 // pred_check_branch
      %39 = sbr.rel (0) target = $region13
    $region12: #{_mlp_pallas.1} parent=1 // pred_region
      _
    $region13: #{_mlp_pallas.1} parent=1 // pred_fallthru
      _
    // Predicated region
    $region14: #{_mlp_pallas.1} parent=1 // pred_check
      _
    $region15: #{_mlp_pallas.1} parent=1 // pred_check_branch
      %41 = sbr.rel (0) target = $region17
    $region16: #{_mlp_pallas.1} parent=1 // pred_region
      _
    $region17: #{_mlp_pallas.1} parent=1 // pred_fallthru
      _
    // Predicated region
    $region18: #{_mlp_pallas.1} parent=1 // pred_check
      _
    $region19: #{_mlp_pallas.1} parent=1 // pred_check_branch
      %43 = sbr.rel (0) target = $region21
    $region20: #{_mlp_pallas.1} parent=1 // pred_region
      _
    $region21: #{_mlp_pallas.1} parent=1 // pred_fallthru
      _
    // Predicated region
    $region22: #{_mlp_pallas.1} parent=1 // pred_check
      _
    $region23: #{_mlp_pallas.1} parent=1 // pred_check_branch
      %45 = sbr.rel (0) target = $region25
    $region24: #{_mlp_pallas.1} parent=1 // pred_region
      _
    $region25: #{_mlp_pallas.1} parent=1 // pred_fallthru
      _
    // Predicated region
    $region26: #{_mlp_pallas.1} parent=1 // pred_check
      _
    $region27: #{_mlp_pallas.1} parent=1 // pred_check_branch
      %47 = sbr.rel (0) target = $region29
    $region28: #{_mlp_pallas.1} parent=1 // pred_region
      _
    $region29: #{_mlp_pallas.1} parent=1 // pred_fallthru
      _
    // Predicated region
    $region30: #{_mlp_pallas.1} parent=1 // pred_check
      _
    $region31: #{_mlp_pallas.1} parent=1 // pred_check_branch
      %49 = sbr.rel (0) target = $region33
    $region32: #{_mlp_pallas.1} parent=1 // pred_region
      %50 = dma.done [#allocation3], 2048
    $region33: #{_mlp_pallas.1} parent=1 // pred_fallthru
      _
    // Predicated region
    $region34: #{_mlp_pallas.1} parent=1 // pred_check
      _
    $region35: #{_mlp_pallas.1} parent=1 // pred_check_branch
      %52 = sbr.rel (0) target = $region37
    $region36: #{_mlp_pallas.1} parent=1 // pred_region
      %53 = dma.done [#allocation5], 256
    $region37: #{_mlp_pallas.1} parent=1 // pred_fallthru
      _
    %v54 = vld [vmem:[#allocation2] sm:$0xff]
    %v55 = vld [vmem:[#allocation2 + $0x8] sm:$0xff]
    %v56 = vld [vmem:[#allocation2 + $0x10] sm:$0xff]
    %v57 = vld [vmem:[#allocation2 + $0x18] sm:$0xff]
    %v58 = vld [vmem:[#allocation2 + $0x20] sm:$0xff]
    %v59 = vld [vmem:[#allocation2 + $0x28] sm:$0xff]
    %v60 = vld [vmem:[#allocation2 + $0x30] sm:$0xff]
    %v61 = vld [vmem:[#allocation2 + $0x38] sm:$0xff]
    %v62 = vld [vmem:[#allocation2 + $0x40] sm:$0xff]
    %v63 = vld [vmem:[#allocation2 + $0x48] sm:$0xff]
    %v64 = vld [vmem:[#allocation2 + $0x50] sm:$0xff]
    %v65 = vld [vmem:[#allocation2 + $0x58] sm:$0xff]
    %v66 = vld [vmem:[#allocation2 + $0x60] sm:$0xff]
    %v67 = vld [vmem:[#allocation2 + $0x68] sm:$0xff]
    %v68 = vld [vmem:[#allocation2 + $0x70] sm:$0xff]
    %v69 = vld [vmem:[#allocation2 + $0x78] sm:$0xff]
    %v70 = vld [vmem:[#allocation4] sm:$0xff]
    %v71 = vld [vmem:[#allocation4 + $0x8] sm:$0xff]
    %v72 = vld [vmem:[%s2] sm:$0x1]
    %v74 = vlaneseq
    %v75 = vshrl.u32 %v74, 7
    %v76 = vsub.s32 0, %v75
    %v77 = vrot.slane %v72, %v76
    %vm79 = vcmask 130048
    %v81 = vsel %vm79, %v54, 0
    %v84 = vsel %vm79, %v55, 0
    %v87 = vsel %vm79, %v56, 0
    %v90 = vsel %vm79, %v57, 0
    %v93 = vsel %vm79, %v58, 0
    %v96 = vsel %vm79, %v59, 0
    %v99 = vsel %vm79, %v60, 0
    %v102 = vsel %vm79, %v61, 0
    %v105 = vsel %vm79, %v62, 0
    %v108 = vsel %vm79, %v63, 0
    %v111 = vsel %vm79, %v64, 0
    %v114 = vsel %vm79, %v65, 0
    %v117 = vsel %vm79, %v66, 0
    %v120 = vsel %vm79, %v67, 0
    %v123 = vsel %vm79, %v68, 0
    %v126 = vsel %vm79, %v69, 0
    %128 = vmatprep.subr.mxu0 0.0
    %129 = vmatpush1.msra.mxu0 0.0
    %130 = vmatprep.subr.mxu0 0.0
    %131 = vmatpush1.msra.mxu0 0.0
    %132 = vmatprep.subr.mxu0 0.0
    %133 = vmatpush1.msra.mxu0 0.0
    %134 = vmatprep.subr.mxu0 0.0
    %135 = vmatpush1.msra.mxu0 0.0
    %136 = vmatprep.subr.mxu0 0.0
    %137 = vmatpush1.msra.mxu0 0.0
    %138 = vmatprep.subr.mxu0 0.0
    %139 = vmatpush1.msra.mxu0 0.0
    %140 = vmatprep.subr.mxu0 0.0
    %141 = vmatpush1.msra.mxu0 0.0
    %142 = vmatprep.subr.mxu0 0.0
    %143 = vmatpush1.msra.mxu0 0.0
    %144 = vmatprep.subr.mxu0 0.0
    %145 = vmatpush1.msra.mxu0 0.0
    %146 = vmatprep.subr.mxu0 0.0
    %147 = vmatpush1.msra.mxu0 0.0
    %148 = vmatprep.subr.mxu0 0.0
    %149 = vmatpush1.msra.mxu0 0.0
    %150 = vmatprep.subr.mxu0 0.0
    %151 = vmatpush1.msra.mxu0 0.0
    %152 = vmatprep.subr.mxu0 0.0
    %153 = vmatpush1.msra.mxu0 0.0
    %154 = vmatprep.subr.mxu0 0.0
    %155 = vmatpush1.msra.mxu0 0.0
    %156 = vmatprep.subr.mxu0 0.0
    %157 = vmatpush1.msra.mxu0 %v71
    %158 = vmatprep.subr.mxu0 0.0
    %159 = vmatpush1.msra.mxu0 %v70
    %160 = vmatprep.subr.mxu0 0.0
    %161 = vmatpush2.msra.mxu0 0.0
    %162 = vmatprep.subr.mxu0 0.0
    %163 = vmatpush2.msra.mxu0 0.0
    %164 = vmatprep.subr.mxu0 0.0
    %165 = vmatpush2.msra.mxu0 0.0
    %166 = vmatprep.subr.mxu0 0.0
    %167 = vmatpush2.msra.mxu0 0.0
    %168 = vmatprep.subr.mxu0 0.0
    %169 = vmatpush2.msra.mxu0 0.0
    %170 = vmatprep.subr.mxu0 0.0
    %171 = vmatpush2.msra.mxu0 0.0
    %172 = vmatprep.subr.mxu0 0.0
    %173 = vmatpush2.msra.mxu0 0.0
    %174 = vmatprep.subr.mxu0 0.0
    %175 = vmatpush2.msra.mxu0 0.0
    %176 = vmatprep.subr.mxu0 0.0
    %177 = vmatpush2.msra.mxu0 0.0
    %178 = vmatprep.subr.mxu0 0.0
    %179 = vmatpush2.msra.mxu0 0.0
    %180 = vmatprep.subr.mxu0 0.0
    %181 = vmatpush2.msra.mxu0 0.0
    %182 = vmatprep.subr.mxu0 0.0
    %183 = vmatpush2.msra.mxu0 0.0
    %184 = vmatprep.subr.mxu0 0.0
    %185 = vmatpush2.msra.mxu0 0.0
    %186 = vmatprep.subr.mxu0 0.0
    %187 = vmatpush2.msra.mxu0 0.0
    %188 = vmatprep.subr.mxu0 0.0
    %189 = vmatpush2.msra.mxu0 0.0
    %190 = vmatprep.subr.mxu0 0.0
    %191 = vmatpush2.msra.mxu0 0.0
    %192 = vmatprep.mubr.f32.mxu0 0.0
    %193 = vmatmul.mubr.f32.gmra.mxu0 %v81
    %v194 = vpop.f32.mrf.mxu0
    %v195 = vadd.f32 %v77, %v194
    %v196 = vpop.f32.mrf.mxu0
    %197 = vmatprep.mubr.f32.mxu0 0.0
    %198 = vmatmul.mubr.f32.gmra.mxu0 %v84
    %v199 = vpop.f32.mrf.mxu0
    %v200 = vadd.f32 %v77, %v199
    %v201 = vpop.f32.mrf.mxu0
    %202 = vmatprep.mubr.f32.mxu0 0.0
    %203 = vmatmul.mubr.f32.gmra.mxu0 %v87
    %v204 = vpop.f32.mrf.mxu0
    %v205 = vadd.f32 %v77, %v204
    %v206 = vpop.f32.mrf.mxu0
    %207 = vmatprep.mubr.f32.mxu0 0.0
    %208 = vmatmul.mubr.f32.gmra.mxu0 %v90
    %v209 = vpop.f32.mrf.mxu0
    %v210 = vadd.f32 %v77, %v209
    %v211 = vpop.f32.mrf.mxu0
    %212 = vmatprep.mubr.f32.mxu0 0.0
    %213 = vmatmul.mubr.f32.gmra.mxu0 %v93
    %v214 = vpop.f32.mrf.mxu0
    %v215 = vadd.f32 %v77, %v214
    %v216 = vpop.f32.mrf.mxu0
    %217 = vmatprep.mubr.f32.mxu0 0.0
    %218 = vmatmul.mubr.f32.gmra.mxu0 %v96
    %v219 = vpop.f32.mrf.mxu0
    %v220 = vadd.f32 %v77, %v219
    %v221 = vpop.f32.mrf.mxu0
    %222 = vmatprep.mubr.f32.mxu0 0.0
    %223 = vmatmul.mubr.f32.gmra.mxu0 %v99
    %v224 = vpop.f32.mrf.mxu0
    %v225 = vadd.f32 %v77, %v224
    %v226 = vpop.f32.mrf.mxu0
    %227 = vmatprep.mubr.f32.mxu0 0.0
    %228 = vmatmul.mubr.f32.gmra.mxu0 %v102
    %v229 = vpop.f32.mrf.mxu0
    %v230 = vadd.f32 %v77, %v229
    %v231 = vpop.f32.mrf.mxu0
    %232 = vmatprep.mubr.f32.mxu0 0.0
    %233 = vmatmul.mubr.f32.gmra.mxu0 %v105
    %v234 = vpop.f32.mrf.mxu0
    %v235 = vadd.f32 %v77, %v234
    %v236 = vpop.f32.mrf.mxu0
    %237 = vmatprep.mubr.f32.mxu0 0.0
    %238 = vmatmul.mubr.f32.gmra.mxu0 %v108
    %v239 = vpop.f32.mrf.mxu0
    %v240 = vadd.f32 %v77, %v239
    %v241 = vpop.f32.mrf.mxu0
    %242 = vmatprep.mubr.f32.mxu0 0.0
    %243 = vmatmul.mubr.f32.gmra.mxu0 %v111
    %v244 = vpop.f32.mrf.mxu0
    %v245 = vadd.f32 %v77, %v244
    %v246 = vpop.f32.mrf.mxu0
    %247 = vmatprep.mubr.f32.mxu0 0.0
    %248 = vmatmul.mubr.f32.gmra.mxu0 %v114
    %v249 = vpop.f32.mrf.mxu0
    %v250 = vadd.f32 %v77, %v249
    %v251 = vpop.f32.mrf.mxu0
    %252 = vmatprep.mubr.f32.mxu0 0.0
    %253 = vmatmul.mubr.f32.gmra.mxu0 %v117
    %v254 = vpop.f32.mrf.mxu0
    %v255 = vadd.f32 %v77, %v254
    %v256 = vpop.f32.mrf.mxu0
    %257 = vmatprep.mubr.f32.mxu0 0.0
    %258 = vmatmul.mubr.f32.gmra.mxu0 %v120
    %v259 = vpop.f32.mrf.mxu0
    %v260 = vadd.f32 %v77, %v259
    %v261 = vpop.f32.mrf.mxu0
    %262 = vmatprep.mubr.f32.mxu0 0.0
    %263 = vmatmul.mubr.f32.gmra.mxu0 %v123
    %v264 = vpop.f32.mrf.mxu0
    %v265 = vadd.f32 %v77, %v264
    %v266 = vpop.f32.mrf.mxu0
    %267 = vmatprep.mubr.f32.mxu0 0.0
    %268 = vmatmul.mubr.f32.gmra.mxu0 %v126
    %v269 = vpop.f32.mrf.mxu0
    %v270 = vadd.f32 %v77, %v269
    %v271 = vpop.f32.mrf.mxu0
    %272 = vdwg.mxu0
    %v273 = vmul.f32 %v195, 0.01
    %v274 = vmul.f32 %v200, 0.01
    %v275 = vmul.f32 %v205, 0.01
    %v276 = vmul.f32 %v210, 0.01
    %v277 = vmul.f32 %v215, 0.01
    %v278 = vmul.f32 %v220, 0.01
    %v279 = vmul.f32 %v225, 0.01
    %v280 = vmul.f32 %v230, 0.01
    %v281 = vmul.f32 %v235, 0.01
    %v282 = vmul.f32 %v240, 0.01
    %v283 = vmul.f32 %v245, 0.01
    %v284 = vmul.f32 %v250, 0.01
    %v285 = vmul.f32 %v255, 0.01
    %v286 = vmul.f32 %v260, 0.01
    %v287 = vmul.f32 %v265, 0.01
    %v288 = vmul.f32 %v270, 0.01
    %v289 = vmax.f32 %v195, %v273
    %v290 = vmax.f32 %v200, %v274
    %v291 = vmax.f32 %v205, %v275
    %v292 = vmax.f32 %v210, %v276
    %v293 = vmax.f32 %v215, %v277
    %v294 = vmax.f32 %v220, %v278
    %v295 = vmax.f32 %v225, %v279
    %v296 = vmax.f32 %v230, %v280
    %v297 = vmax.f32 %v235, %v281
    %v298 = vmax.f32 %v240, %v282
    %v299 = vmax.f32 %v245, %v283
    %v300 = vmax.f32 %v250, %v284
    %v301 = vmax.f32 %v255, %v285
    %v302 = vmax.f32 %v260, %v286
    %v303 = vmax.f32 %v265, %v287
    %v304 = vmax.f32 %v270, %v288
    %v305 = vld [vmem:[%s3] sm:$0xff]
    %v306 = vld [vmem:[%s3 + $0x8] sm:$0xff]
    %v307 = vld [vmem:[%s3 + $0x10] sm:$0xff]
    %v308 = vld [vmem:[%s3 + $0x18] sm:$0xff]
    %v309 = vld [vmem:[%s3 + $0x20] sm:$0xff]
    %v310 = vld [vmem:[%s3 + $0x28] sm:$0xff]
    %v311 = vld [vmem:[%s3 + $0x30] sm:$0xff]
    %v312 = vld [vmem:[%s3 + $0x38] sm:$0xff]
    %v313 = vld [vmem:[%s4] sm:$0x1]
    %v315 = vlaneseq
    %v316 = vshrl.u32 %v315, 7
    %v317 = vsub.s32 0, %v316
    %v318 = vrot.slane %v313, %v317
    %vm320 = vcmask 523264
    %v322 = vsel %vm320, %v289, 0
    %v325 = vsel %vm320, %v290, 0
    %v328 = vsel %vm320, %v291, 0
    %v331 = vsel %vm320, %v292, 0
    %v334 = vsel %vm320, %v293, 0
    %v337 = vsel %vm320, %v294, 0
    %v340 = vsel %vm320, %v295, 0
    %v343 = vsel %vm320, %v296, 0
    %v346 = vsel %vm320, %v297, 0
    %v349 = vsel %vm320, %v298, 0
    %v352 = vsel %vm320, %v299, 0
    %v355 = vsel %vm320, %v300, 0
    %v358 = vsel %vm320, %v301, 0
    %v361 = vsel %vm320, %v302, 0
    %v364 = vsel %vm320, %v303, 0
    %v367 = vsel %vm320, %v304, 0
    %369 = vmatprep.subr.mxu0 0.0
    %370 = vmatpush1.msra.mxu0 0.0
    %371 = vmatprep.subr.mxu0 0.0
    %372 = vmatpush1.msra.mxu0 0.0
    %373 = vmatprep.subr.mxu0 0.0
    %374 = vmatpush1.msra.mxu0 0.0
    %375 = vmatprep.subr.mxu0 0.0
    %376 = vmatpush1.msra.mxu0 0.0
    %377 = vmatprep.subr.mxu0 0.0
    %378 = vmatpush1.msra.mxu0 0.0
    %379 = vmatprep.subr.mxu0 0.0
    %380 = vmatpush1.msra.mxu0 0.0
    %381 = vmatprep.subr.mxu0 0.0
    %382 = vmatpush1.msra.mxu0 0.0
    %383 = vmatprep.subr.mxu0 0.0
    %384 = vmatpush1.msra.mxu0 0.0
    %385 = vmatprep.subr.mxu0 0.0
    %386 = vmatpush1.msra.mxu0 %v312
    %387 = vmatprep.subr.mxu0 0.0
    %388 = vmatpush1.msra.mxu0 %v311
    %389 = vmatprep.subr.mxu0 0.0
    %390 = vmatpush1.msra.mxu0 %v310
    %391 = vmatprep.subr.mxu0 0.0
    %392 = vmatpush1.msra.mxu0 %v309
    %393 = vmatprep.subr.mxu0 0.0
    %394 = vmatpush1.msra.mxu0 %v308
    %395 = vmatprep.subr.mxu0 0.0
    %396 = vmatpush1.msra.mxu0 %v307
    %397 = vmatprep.subr.mxu0 0.0
    %398 = vmatpush1.msra.mxu0 %v306
    %399 = vmatprep.subr.mxu0 0.0
    %400 = vmatpush1.msra.mxu0 %v305
    %401 = vmatprep.subr.mxu0 0.0
    %402 = vmatpush2.msra.mxu0 0.0
    %403 = vmatprep.subr.mxu0 0.0
    %404 = vmatpush2.msra.mxu0 0.0
    %405 = vmatprep.subr.mxu0 0.0
    %406 = vmatpush2.msra.mxu0 0.0
    %407 = vmatprep.subr.mxu0 0.0
    %408 = vmatpush2.msra.mxu0 0.0
    %409 = vmatprep.subr.mxu0 0.0
    %410 = vmatpush2.msra.mxu0 0.0
    %411 = vmatprep.subr.mxu0 0.0
    %412 = vmatpush2.msra.mxu0 0.0
    %413 = vmatprep.subr.mxu0 0.0
    %414 = vmatpush2.msra.mxu0 0.0
    %415 = vmatprep.subr.mxu0 0.0
    %416 = vmatpush2.msra.mxu0 0.0
    %417 = vmatprep.subr.mxu0 0.0
    %418 = vmatpush2.msra.mxu0 0.0
    %419 = vmatprep.subr.mxu0 0.0
    %420 = vmatpush2.msra.mxu0 0.0
    %421 = vmatprep.subr.mxu0 0.0
    %422 = vmatpush2.msra.mxu0 0.0
    %423 = vmatprep.subr.mxu0 0.0
    %424 = vmatpush2.msra.mxu0 0.0
    %425 = vmatprep.subr.mxu0 0.0
    %426 = vmatpush2.msra.mxu0 0.0
    %427 = vmatprep.subr.mxu0 0.0
    %428 = vmatpush2.msra.mxu0 0.0
    %429 = vmatprep.subr.mxu0 0.0
    %430 = vmatpush2.msra.mxu0 0.0
    %431 = vmatprep.subr.mxu0 0.0
    %432 = vmatpush2.msra.mxu0 0.0
    %433 = vmatprep.mubr.f32.mxu0 0.0
    %434 = vmatmul.mubr.f32.gmra.mxu0 %v322
    %v435 = vpop.f32.mrf.mxu0
    %v436 = vadd.f32 %v318, %v435
    %v437 = vpop.f32.mrf.mxu0
    %438 = vmatprep.mubr.f32.mxu0 0.0
    %439 = vmatmul.mubr.f32.gmra.mxu0 %v325
    %v440 = vpop.f32.mrf.mxu0
    %v441 = vadd.f32 %v318, %v440
    %v442 = vpop.f32.mrf.mxu0
    %443 = vmatprep.mubr.f32.mxu0 0.0
    %444 = vmatmul.mubr.f32.gmra.mxu0 %v328
    %v445 = vpop.f32.mrf.mxu0
    %v446 = vadd.f32 %v318, %v445
    %v447 = vpop.f32.mrf.mxu0
    %448 = vmatprep.mubr.f32.mxu0 0.0
    %449 = vmatmul.mubr.f32.gmra.mxu0 %v331
    %v450 = vpop.f32.mrf.mxu0
    %v451 = vadd.f32 %v318, %v450
    %v452 = vpop.f32.mrf.mxu0
    %453 = vmatprep.mubr.f32.mxu0 0.0
    %454 = vmatmul.mubr.f32.gmra.mxu0 %v334
    %v455 = vpop.f32.mrf.mxu0
    %v456 = vadd.f32 %v318, %v455
    %v457 = vpop.f32.mrf.mxu0
    %458 = vmatprep.mubr.f32.mxu0 0.0
    %459 = vmatmul.mubr.f32.gmra.mxu0 %v337
    %v460 = vpop.f32.mrf.mxu0
    %v461 = vadd.f32 %v318, %v460
    %v462 = vpop.f32.mrf.mxu0
    %463 = vmatprep.mubr.f32.mxu0 0.0
    %464 = vmatmul.mubr.f32.gmra.mxu0 %v340
    %v465 = vpop.f32.mrf.mxu0
    %v466 = vadd.f32 %v318, %v465
    %v467 = vpop.f32.mrf.mxu0
    %468 = vmatprep.mubr.f32.mxu0 0.0
    %469 = vmatmul.mubr.f32.gmra.mxu0 %v343
    %v470 = vpop.f32.mrf.mxu0
    %v471 = vadd.f32 %v318, %v470
    %v472 = vpop.f32.mrf.mxu0
    %473 = vmatprep.mubr.f32.mxu0 0.0
    %474 = vmatmul.mubr.f32.gmra.mxu0 %v346
    %v475 = vpop.f32.mrf.mxu0
    %v476 = vadd.f32 %v318, %v475
    %v477 = vpop.f32.mrf.mxu0
    %478 = vmatprep.mubr.f32.mxu0 0.0
    %479 = vmatmul.mubr.f32.gmra.mxu0 %v349
    %v480 = vpop.f32.mrf.mxu0
    %v481 = vadd.f32 %v318, %v480
    %v482 = vpop.f32.mrf.mxu0
    %483 = vmatprep.mubr.f32.mxu0 0.0
    %484 = vmatmul.mubr.f32.gmra.mxu0 %v352
    %v485 = vpop.f32.mrf.mxu0
    %v486 = vadd.f32 %v318, %v485
    %v487 = vpop.f32.mrf.mxu0
    %488 = vmatprep.mubr.f32.mxu0 0.0
    %489 = vmatmul.mubr.f32.gmra.mxu0 %v355
    %v490 = vpop.f32.mrf.mxu0
    %v491 = vadd.f32 %v318, %v490
    %v492 = vpop.f32.mrf.mxu0
    %493 = vmatprep.mubr.f32.mxu0 0.0
    %494 = vmatmul.mubr.f32.gmra.mxu0 %v358
    %v495 = vpop.f32.mrf.mxu0
    %v496 = vadd.f32 %v318, %v495
    %v497 = vpop.f32.mrf.mxu0
    %498 = vmatprep.mubr.f32.mxu0 0.0
    %499 = vmatmul.mubr.f32.gmra.mxu0 %v361
    %v500 = vpop.f32.mrf.mxu0
    %v501 = vadd.f32 %v318, %v500
    %v502 = vpop.f32.mrf.mxu0
    %503 = vmatprep.mubr.f32.mxu0 0.0
    %504 = vmatmul.mubr.f32.gmra.mxu0 %v364
    %v505 = vpop.f32.mrf.mxu0
    %v506 = vadd.f32 %v318, %v505
    %v507 = vpop.f32.mrf.mxu0
    %508 = vmatprep.mubr.f32.mxu0 0.0
    %509 = vmatmul.mubr.f32.gmra.mxu0 %v367
    %v510 = vpop.f32.mrf.mxu0
    %v511 = vadd.f32 %v318, %v510
    %v512 = vpop.f32.mrf.mxu0
    %513 = vdwg.mxu0
    %v514 = vmul.f32 %v436, 0.01
    %v515 = vmul.f32 %v441, 0.01
    %v516 = vmul.f32 %v446, 0.01
    %v517 = vmul.f32 %v451, 0.01
    %v518 = vmul.f32 %v456, 0.01
    %v519 = vmul.f32 %v461, 0.01
    %v520 = vmul.f32 %v466, 0.01
    %v521 = vmul.f32 %v471, 0.01
    %v522 = vmul.f32 %v476, 0.01
    %v523 = vmul.f32 %v481, 0.01
    %v524 = vmul.f32 %v486, 0.01
    %v525 = vmul.f32 %v491, 0.01
    %v526 = vmul.f32 %v496, 0.01
    %v527 = vmul.f32 %v501, 0.01
    %v528 = vmul.f32 %v506, 0.01
    %v529 = vmul.f32 %v511, 0.01
    %v530 = vmax.f32 %v436, %v514
    %v531 = vmax.f32 %v441, %v515
    %v532 = vmax.f32 %v446, %v516
    %v533 = vmax.f32 %v451, %v517
    %v534 = vmax.f32 %v456, %v518
    %v535 = vmax.f32 %v461, %v519
    %v536 = vmax.f32 %v466, %v520
    %v537 = vmax.f32 %v471, %v521
    %v538 = vmax.f32 %v476, %v522
    %v539 = vmax.f32 %v481, %v523
    %v540 = vmax.f32 %v486, %v524
    %v541 = vmax.f32 %v491, %v525
    %v542 = vmax.f32 %v496, %v526
    %v543 = vmax.f32 %v501, %v527
    %v544 = vmax.f32 %v506, %v528
    %v545 = vmax.f32 %v511, %v529
    %v546 = vld [vmem:[%s5] sm:$0xff]
    %v547 = vld [vmem:[%s5 + $0x8] sm:$0xff]
    %v548 = vld [vmem:[%s5 + $0x10] sm:$0xff]
    %v549 = vld [vmem:[%s5 + $0x18] sm:$0xff]
    %v550 = vld [vmem:[%s5 + $0x20] sm:$0xff]
    %v551 = vld [vmem:[%s5 + $0x28] sm:$0xff]
    %v552 = vld [vmem:[%s5 + $0x30] sm:$0xff]
    %v553 = vld [vmem:[%s5 + $0x38] sm:$0xff]
    %v554 = vld [vmem:[%s6] sm:$0x1]
    %v556 = vlaneseq
    %v557 = vshrl.u32 %v556, 7
    %v558 = vsub.s32 0, %v557
    %v559 = vrot.slane %v554, %v558
    %v562 = vsel %vm320, %v530, 0
    %v565 = vsel %vm320, %v531, 0
    %v568 = vsel %vm320, %v532, 0
    %v571 = vsel %vm320, %v533, 0
    %v574 = vsel %vm320, %v534, 0
    %v577 = vsel %vm320, %v535, 0
    %v580 = vsel %vm320, %v536, 0
    %v583 = vsel %vm320, %v537, 0
    %v586 = vsel %vm320, %v538, 0
    %v589 = vsel %vm320, %v539, 0
    %v592 = vsel %vm320, %v540, 0
    %v595 = vsel %vm320, %v541, 0
    %v598 = vsel %vm320, %v542, 0
    %v601 = vsel %vm320, %v543, 0
    %v604 = vsel %vm320, %v544, 0
    %v607 = vsel %vm320, %v545, 0
    %609 = vmatprep.subr.mxu0 0.0
    %610 = vmatpush1.msra.mxu0 0.0
    %611 = vmatprep.subr.mxu0 0.0
    %612 = vmatpush1.msra.mxu0 0.0
    %613 = vmatprep.subr.mxu0 0.0
    %614 = vmatpush1.msra.mxu0 0.0
    %615 = vmatprep.subr.mxu0 0.0
    %616 = vmatpush1.msra.mxu0 0.0
    %617 = vmatprep.subr.mxu0 0.0
    %618 = vmatpush1.msra.mxu0 0.0
    %619 = vmatprep.subr.mxu0 0.0
    %620 = vmatpush1.msra.mxu0 0.0
    %621 = vmatprep.subr.mxu0 0.0
    %622 = vmatpush1.msra.mxu0 0.0
    %623 = vmatprep.subr.mxu0 0.0
    %624 = vmatpush1.msra.mxu0 0.0
    %625 = vmatprep.subr.mxu0 0.0
    %626 = vmatpush1.msra.mxu0 %v553
    %627 = vmatprep.subr.mxu0 0.0
    %628 = vmatpush1.msra.mxu0 %v552
    %629 = vmatprep.subr.mxu0 0.0
    %630 = vmatpush1.msra.mxu0 %v551
    %631 = vmatprep.subr.mxu0 0.0
    %632 = vmatpush1.msra.mxu0 %v550
    %633 = vmatprep.subr.mxu0 0.0
    %634 = vmatpush1.msra.mxu0 %v549
    %635 = vmatprep.subr.mxu0 0.0
    %636 = vmatpush1.msra.mxu0 %v548
    %637 = vmatprep.subr.mxu0 0.0
    %638 = vmatpush1.msra.mxu0 %v547
    %639 = vmatprep.subr.mxu0 0.0
    %640 = vmatpush1.msra.mxu0 %v546
    %641 = vmatprep.subr.mxu0 0.0
    %642 = vmatpush2.msra.mxu0 0.0
    %643 = vmatprep.subr.mxu0 0.0
    %644 = vmatpush2.msra.mxu0 0.0
    %645 = vmatprep.subr.mxu0 0.0
    %646 = vmatpush2.msra.mxu0 0.0
    %647 = vmatprep.subr.mxu0 0.0
    %648 = vmatpush2.msra.mxu0 0.0
    %649 = vmatprep.subr.mxu0 0.0
    %650 = vmatpush2.msra.mxu0 0.0
    %651 = vmatprep.subr.mxu0 0.0
    %652 = vmatpush2.msra.mxu0 0.0
    %653 = vmatprep.subr.mxu0 0.0
    %654 = vmatpush2.msra.mxu0 0.0
    %655 = vmatprep.subr.mxu0 0.0
    %656 = vmatpush2.msra.mxu0 0.0
    %657 = vmatprep.subr.mxu0 0.0
    %658 = vmatpush2.msra.mxu0 0.0
    %659 = vmatprep.subr.mxu0 0.0
    %660 = vmatpush2.msra.mxu0 0.0
    %661 = vmatprep.subr.mxu0 0.0
    %662 = vmatpush2.msra.mxu0 0.0
    %663 = vmatprep.subr.mxu0 0.0
    %664 = vmatpush2.msra.mxu0 0.0
    %665 = vmatprep.subr.mxu0 0.0
    %666 = vmatpush2.msra.mxu0 0.0
    %667 = vmatprep.subr.mxu0 0.0
    %668 = vmatpush2.msra.mxu0 0.0
    %669 = vmatprep.subr.mxu0 0.0
    %670 = vmatpush2.msra.mxu0 0.0
    %671 = vmatprep.subr.mxu0 0.0
    %672 = vmatpush2.msra.mxu0 0.0
    %673 = vmatprep.mubr.f32.mxu0 0.0
    %674 = vmatmul.mubr.f32.gmra.mxu0 %v562
    %v675 = vpop.f32.mrf.mxu0
    %v676 = vadd.f32 %v559, %v675
    %v677 = vpop.f32.mrf.mxu0
    %678 = vmatprep.mubr.f32.mxu0 0.0
    %679 = vmatmul.mubr.f32.gmra.mxu0 %v565
    %v680 = vpop.f32.mrf.mxu0
    %v681 = vadd.f32 %v559, %v680
    %v682 = vpop.f32.mrf.mxu0
    %683 = vmatprep.mubr.f32.mxu0 0.0
    %684 = vmatmul.mubr.f32.gmra.mxu0 %v568
    %v685 = vpop.f32.mrf.mxu0
    %v686 = vadd.f32 %v559, %v685
    %v687 = vpop.f32.mrf.mxu0
    %688 = vmatprep.mubr.f32.mxu0 0.0
    %689 = vmatmul.mubr.f32.gmra.mxu0 %v571
    %v690 = vpop.f32.mrf.mxu0
    %v691 = vadd.f32 %v559, %v690
    %v692 = vpop.f32.mrf.mxu0
    %693 = vmatprep.mubr.f32.mxu0 0.0
    %694 = vmatmul.mubr.f32.gmra.mxu0 %v574
    %v695 = vpop.f32.mrf.mxu0
    %v696 = vadd.f32 %v559, %v695
    %v697 = vpop.f32.mrf.mxu0
    %698 = vmatprep.mubr.f32.mxu0 0.0
    %699 = vmatmul.mubr.f32.gmra.mxu0 %v577
    %v700 = vpop.f32.mrf.mxu0
    %v701 = vadd.f32 %v559, %v700
    %v702 = vpop.f32.mrf.mxu0
    %703 = vmatprep.mubr.f32.mxu0 0.0
    %704 = vmatmul.mubr.f32.gmra.mxu0 %v580
    %v705 = vpop.f32.mrf.mxu0
    %v706 = vadd.f32 %v559, %v705
    %v707 = vpop.f32.mrf.mxu0
    %708 = vmatprep.mubr.f32.mxu0 0.0
    %709 = vmatmul.mubr.f32.gmra.mxu0 %v583
    %v710 = vpop.f32.mrf.mxu0
    %v711 = vadd.f32 %v559, %v710
    %v712 = vpop.f32.mrf.mxu0
    %713 = vmatprep.mubr.f32.mxu0 0.0
    %714 = vmatmul.mubr.f32.gmra.mxu0 %v586
    %v715 = vpop.f32.mrf.mxu0
    %v716 = vadd.f32 %v559, %v715
    %v717 = vpop.f32.mrf.mxu0
    %718 = vmatprep.mubr.f32.mxu0 0.0
    %719 = vmatmul.mubr.f32.gmra.mxu0 %v589
    %v720 = vpop.f32.mrf.mxu0
    %v721 = vadd.f32 %v559, %v720
    %v722 = vpop.f32.mrf.mxu0
    %723 = vmatprep.mubr.f32.mxu0 0.0
    %724 = vmatmul.mubr.f32.gmra.mxu0 %v592
    %v725 = vpop.f32.mrf.mxu0
    %v726 = vadd.f32 %v559, %v725
    %v727 = vpop.f32.mrf.mxu0
    %728 = vmatprep.mubr.f32.mxu0 0.0
    %729 = vmatmul.mubr.f32.gmra.mxu0 %v595
    %v730 = vpop.f32.mrf.mxu0
    %v731 = vadd.f32 %v559, %v730
    %v732 = vpop.f32.mrf.mxu0
    %733 = vmatprep.mubr.f32.mxu0 0.0
    %734 = vmatmul.mubr.f32.gmra.mxu0 %v598
    %v735 = vpop.f32.mrf.mxu0
    %v736 = vadd.f32 %v559, %v735
    %v737 = vpop.f32.mrf.mxu0
    %738 = vmatprep.mubr.f32.mxu0 0.0
    %739 = vmatmul.mubr.f32.gmra.mxu0 %v601
    %v740 = vpop.f32.mrf.mxu0
    %v741 = vadd.f32 %v559, %v740
    %v742 = vpop.f32.mrf.mxu0
    %743 = vmatprep.mubr.f32.mxu0 0.0
    %744 = vmatmul.mubr.f32.gmra.mxu0 %v604
    %v745 = vpop.f32.mrf.mxu0
    %v746 = vadd.f32 %v559, %v745
    %v747 = vpop.f32.mrf.mxu0
    %748 = vmatprep.mubr.f32.mxu0 0.0
    %749 = vmatmul.mubr.f32.gmra.mxu0 %v607
    %v750 = vpop.f32.mrf.mxu0
    %v751 = vadd.f32 %v559, %v750
    %v752 = vpop.f32.mrf.mxu0
    %753 = vdwg.mxu0
    %vm754 = vcmask 64512
    %755 = vst.msk [vmem:[#allocation6] sm:$0xff] %vm754, %v676
    %756 = vst.msk [vmem:[#allocation6 + $0x8] sm:$0xff] %vm754, %v681
    %757 = vst.msk [vmem:[#allocation6 + $0x10] sm:$0xff] %vm754, %v686
    %758 = vst.msk [vmem:[#allocation6 + $0x18] sm:$0xff] %vm754, %v691
    %759 = vst.msk [vmem:[#allocation6 + $0x20] sm:$0xff] %vm754, %v696
    %760 = vst.msk [vmem:[#allocation6 + $0x28] sm:$0xff] %vm754, %v701
    %761 = vst.msk [vmem:[#allocation6 + $0x30] sm:$0xff] %vm754, %v706
    %762 = vst.msk [vmem:[#allocation6 + $0x38] sm:$0xff] %vm754, %v711
    %763 = vst.msk [vmem:[#allocation6 + $0x40] sm:$0xff] %vm754, %v716
    %764 = vst.msk [vmem:[#allocation6 + $0x48] sm:$0xff] %vm754, %v721
    %765 = vst.msk [vmem:[#allocation6 + $0x50] sm:$0xff] %vm754, %v726
    %766 = vst.msk [vmem:[#allocation6 + $0x58] sm:$0xff] %vm754, %v731
    %767 = vst.msk [vmem:[#allocation6 + $0x60] sm:$0xff] %vm754, %v736
    %768 = vst.msk [vmem:[#allocation6 + $0x68] sm:$0xff] %vm754, %v741
    %769 = vst.msk [vmem:[#allocation6 + $0x70] sm:$0xff] %vm754, %v746
    %770 = vst.msk [vmem:[#allocation6 + $0x78] sm:$0xff] %vm754, %v751
    // Predicated region
    $region38: #{_mlp_pallas.1} parent=1 // pred_check
      _
    $region39: #{_mlp_pallas.1} parent=1 // pred_check_branch
      %772 = sbr.rel (0) target = $region41
    $region40: #{_mlp_pallas.1} parent=1 // pred_region
      // Predicated region
      $region42: #{_mlp_pallas.1} parent=40 // pred_check
        _
      $region43: #{_mlp_pallas.1} parent=40 // pred_check_branch
        %774 = sbr.rel (0) target = $region45
      $region44: #{_mlp_pallas.1} parent=40 // pred_region
        // Predicated region
        $region46: #{_mlp_pallas.1} parent=44 // pred_check
          _
        $region47: #{_mlp_pallas.1} parent=44 // pred_check_branch
          %776 = sbr.rel (0) target = $region49
        $region48: #{_mlp_pallas.1} parent=44 // pred_region
          // Predicated region
          $region61: #{_mlp_pallas.1} parent=48 // pred_check
            _
          $region62: #{_mlp_pallas.1} parent=48 // pred_check_branch
            %794 = sbr.rel (0) target = $region64
          $region63: #{_mlp_pallas.1} parent=48 // pred_region
            loop: start=0, step=1, limit=1
            $region65: #{_mlp_pallas.1} parent=63 // loop_pre_header
              _
            $region66: #{_mlp_pallas.1} parent=63 // loop_header
              %s796 = sphi 0, %s800
              %p797 = scmp.ge.s32.totalorder %s796, 1
              %s801 = sphi [#allocation6], [#allocation6]
              %s802 = sphi %s7, %s7
            $region67: #{_mlp_pallas.1} parent=63 // loop_header_branch
              %799 = sbr.rel (%p797) target = $region71
            $region68: #{_mlp_pallas.1} parent=63 // loop_body
              %v803 = vld [vmem:[%s801] sm:$0xff]
              %804 = vst [vmem:[%s802] sm:$0xff] %v803
              %v805 = vld [vmem:[%s801 + $0x8] sm:$0xff]
              %806 = vst [vmem:[%s802 + $0x8] sm:$0xff] %v805
            $region69: #{_mlp_pallas.1} parent=63 // loop_footer
              %s800 = sadd.s32 1, %s796
            $region70: #{_mlp_pallas.1} parent=63 // loop_footer_branch
              %795 = sbr.rel target = $region66
            $region71: #{_mlp_pallas.1} parent=63 // loop_exit
              _
          $region64: #{_mlp_pallas.1} parent=48 // pred_fallthru
            _
          // Predicated region
          $region72: #{_mlp_pallas.1} parent=48 // pred_check
            _
          $region73: #{_mlp_pallas.1} parent=48 // pred_check_branch
            %808 = sbr.rel target = $region75
          $region74: #{_mlp_pallas.1} parent=48 // pred_region
            _
          $region75: #{_mlp_pallas.1} parent=48 // pred_fallthru
            _
        $region49: #{_mlp_pallas.1} parent=44 // pred_fallthru
          _
        // Predicated region
        $region50: #{_mlp_pallas.1} parent=44 // pred_check
          _
        $region51: #{_mlp_pallas.1} parent=44 // pred_check_branch
          %778 = sbr.rel target = $region53
        $region52: #{_mlp_pallas.1} parent=44 // pred_region
          %s780 = ssub.s32 256, 1
          loop: start=0, step=1, limit=1
          $region54: #{_mlp_pallas.1} parent=52 // loop_pre_header
            _
          $region55: #{_mlp_pallas.1} parent=52 // loop_header
            %s782 = sphi 0, %s786
            %p783 = scmp.ge.s32.totalorder %s782, 1
            %s787 = sphi [#allocation6], [#allocation6]
            %s788 = sphi %s7, %s7
          $region56: #{_mlp_pallas.1} parent=52 // loop_header_branch
            %785 = sbr.rel (%p783) target = $region60
          $region57: #{_mlp_pallas.1} parent=52 // loop_body
            %v789 = vld [vmem:[%s787] sm:%s780]
            %790 = vst [vmem:[%s788] sm:%s780] %v789
            %v791 = vld [vmem:[%s787 + $0x8] sm:%s780]
            %792 = vst [vmem:[%s788 + $0x8] sm:%s780] %v791
          $region58: #{_mlp_pallas.1} parent=52 // loop_footer
            %s786 = sadd.s32 1, %s782
          $region59: #{_mlp_pallas.1} parent=52 // loop_footer_branch
            %781 = sbr.rel target = $region55
          $region60: #{_mlp_pallas.1} parent=52 // loop_exit
            _
        $region53: #{_mlp_pallas.1} parent=44 // pred_fallthru
          _
      $region45: #{_mlp_pallas.1} parent=40 // pred_fallthru
        _
      %809 = vnop
    $region41: #{_mlp_pallas.1} parent=1 // pred_fallthru
      _
    // Predicated region
    $region76: #{_mlp_pallas.1} parent=1 // pred_check
      _
    $region77: #{_mlp_pallas.1} parent=1 // pred_check_branch
      %811 = sbr.rel (0) target = $region79
    $region78: #{_mlp_pallas.1} parent=1 // pred_region
      _
    $region79: #{_mlp_pallas.1} parent=1 // pred_fallthru
      _
    %812 = vsyncpa [#allocation3], 1
    %813 = vsyncpa [#allocation5], 1

</llo_original>
